<compile_context>
chip_gen: v7x
topology: tpu7x:2x2x1
jax: 0.10.0
libtpu: 0.0.40
codegen_flags: <defaults>
</compile_context>

<pallas_src>
import jax
import jax.numpy as jnp
from jax.experimental import pallas as pl
from jax.experimental.pallas import tpu as pltpu

HIDDEN = 64
PAD_N = 128          # lane-dense padded output width (one full vreg lane dim)
NEG_BIG = -1e30      # padded-logit bias -> exp underflows to exactly 0 in f32


def _round_up(x, m):
    return ((x + m - 1) // m) * m


def actor_kernel(obs_ref, w1_ref, b1_ref, w2_ref, b2_ref, w3_ref, b3_ref, out_ref):
    x = obs_ref[...]                      # (TILE_B, obs_dim) f32
    # Hoisted single bias loads (weights/biases are VMEM-resident via constant index_map).
    b1 = b1_ref[...]
    b2 = b2_ref[...]
    b3 = b3_ref[...]

    # Layer 1: Linear + ReLU (MXU matmul, f32 accumulate)
    h1 = jnp.dot(x, w1_ref[...], preferred_element_type=jnp.float32) + b1
    h1 = jnp.maximum(h1, 0.0)

    # Layer 2: Linear + ReLU
    h2 = jnp.dot(h1, w2_ref[...], preferred_element_type=jnp.float32) + b2
    h2 = jnp.maximum(h2, 0.0)

    # Layer 3: Linear -> 128-lane padded logits (padded lanes ~= -1e30)
    logits = jnp.dot(h2, w3_ref[...], preferred_element_type=jnp.float32) + b3

    # Numerically stable softmax over the padded lane dim; padded lanes contribute 0.
    m = jnp.max(logits, axis=-1, keepdims=True)
    e = jnp.exp(logits - m)
    denom = jnp.sum(e, axis=-1, keepdims=True)
    # Exact divide (not approx reciprocal) so each row sums to 1 within f32 rounding.
    out_ref[...] = e / denom


def actor_forward(obs, params, tile_b=512):
    """obs: (B, obs_dim) float32; params: dict of w1,b1,w2,b2,w3,b3 -> (B, action_dim) probs."""
    obs = obs.astype(jnp.float32)
    B, obs_dim = obs.shape
    action_dim = params["w3"].shape[1]

    # Pad the last layer to a full 128-lane output. Zero weight columns + NEG_BIG bias
    # => padded logits get softmax probability exactly 0, real lanes are unchanged.
    w3p = jnp.zeros((HIDDEN, PAD_N), jnp.float32).at[:, :action_dim].set(
        params["w3"].astype(jnp.float32))
    b3p = jnp.full((1, PAD_N), NEG_BIG, jnp.float32).at[:, :action_dim].set(
        params["b3"].astype(jnp.float32))

    # Batch tile: large to amortize ~0.35us/step overhead, multiple of 8 sublanes,
    # but no bigger than the (padded) batch. At tile_b=512 f32 the working set is
    # ~2*(512*obs_dim + 512*128)*4B + ~60KB of weights << 32 MiB scoped VMEM (v7x-safe).
    tb = min(tile_b, _round_up(B, 8))
    Bp = _round_up(B, tb)
    if Bp != B:
        # Padded tail rows compute a harmless softmax of finite logits and are sliced off.
        obs = jnp.pad(obs, ((0, Bp - B), (0, 0)))

    grid = (Bp // tb,)
    const = lambda i: (0, 0)  # weights/biases: same block every step -> stay VMEM-resident

    probs_padded = pl.pallas_call(
        actor_kernel,
        out_shape=jax.ShapeDtypeStruct((Bp, PAD_N), jnp.float32),
        grid=grid,
        in_specs=[
            pl.BlockSpec((tb, obs_dim), lambda i: (i, 0)),      # obs: streamed batch tiles
            pl.BlockSpec((obs_dim, HIDDEN), const),             # w1
            pl.BlockSpec((1, HIDDEN), const),                   # b1
            pl.BlockSpec((HIDDEN, HIDDEN), const),              # w2
            pl.BlockSpec((1, HIDDEN), const),                   # b2
            pl.BlockSpec((HIDDEN, PAD_N), const),               # w3 (lane-padded)
            pl.BlockSpec((1, PAD_N), const),                    # b3 (lane-padded)
        ],
        out_specs=pl.BlockSpec((tb, PAD_N), lambda i: (i, 0)),  # lane-dense output slab
        compiler_params=pltpu.CompilerParams(
            dimension_semantics=("parallel",),                  # v7x megacore sharding
        ),
    )(obs,
      params["w1"].astype(jnp.float32), params["b1"].astype(jnp.float32),
      params["w2"].astype(jnp.float32), params["b2"].astype(jnp.float32),
      w3p, b3p)

    return probs_padded[:B, :action_dim]


def init_params(key, obs_dim, action_dim):
    """Deterministic init mimicking PyTorch's U(-1/sqrt(fan_in), 1/sqrt(fan_in))."""
    ks = jax.random.split(key, 6)

    def lin(kw, kb, fan_in, fan_out):
        bound = 1.0 / jnp.sqrt(jnp.float32(fan_in))
        w = jax.random.uniform(kw, (fan_in, fan_out), jnp.float32, -bound, bound)
        b = jax.random.uniform(kb, (1, fan_out), jnp.float32, -bound, bound)
        return w, b

    w1, b1 = lin(ks[0], ks[1], obs_dim, HIDDEN)
    w2, b2 = lin(ks[2], ks[3], HIDDEN, HIDDEN)
    w3, b3 = lin(ks[4], ks[5], HIDDEN, action_dim)
    return {"w1": w1, "b1": b1, "w2": w2, "b2": b2, "w3": w3, "b3": b3}


def actor_reference(obs, p):
    h1 = jnp.maximum(obs @ p["w1"] + p["b1"], 0.0)
    h2 = jnp.maximum(h1 @ p["w2"] + p["b2"], 0.0)
    logits = h2 @ p["w3"] + p["b3"]
    return jax.nn.softmax(logits, axis=-1)


if __name__ == "__main__":
    key = jax.random.PRNGKey(0)
    k_obs, k_params = jax.random.split(key)

    batch, obs_dim, action_dim = 8, 32, 8
    obs = jax.random.normal(k_obs, (batch, obs_dim), dtype=jnp.float32)
    params = init_params(k_params, obs_dim, action_dim)

    probs = actor_forward(obs, params)
    probs = jax.block_until_ready(probs)

    # Correctness check against a pure-JAX reference.
    ref = actor_reference(obs, params)
    assert probs.shape == (batch, action_dim)
    assert jnp.allclose(probs, ref, atol=1e-4, rtol=1e-4), float(jnp.max(jnp.abs(probs - ref)))
    assert jnp.allclose(jnp.sum(probs, axis=-1), 1.0, atol=1e-5)
    assert bool(jnp.all(jnp.isfinite(probs)))

    print("KERNEL_OK")
</pallas_src>

<mosaic_0001>
module attributes {stable_mosaic.version = 11 : i64} {
  func.func @actor_kernel(%arg0: i32, %arg1: memref<8x32xf32, #tpu.memory_space<vmem>>, %arg2: memref<32x64xf32, #tpu.memory_space<vmem>>, %arg3: memref<1x64xf32, #tpu.memory_space<vmem>>, %arg4: memref<64x64xf32, #tpu.memory_space<vmem>>, %arg5: memref<1x64xf32, #tpu.memory_space<vmem>>, %arg6: memref<64x128xf32, #tpu.memory_space<vmem>>, %arg7: memref<1x128xf32, #tpu.memory_space<vmem>>, %arg8: memref<8x128xf32, #tpu.memory_space<vmem>>) attributes {dimension_semantics = [#tpu.dimension_semantics<parallel>], iteration_bounds = array<i64: 1>, scalar_prefetch = 0 : i64, scratch_operands = 0 : i64, tpu.core_type = #tpu.core_type<tc>, window_params = [{transform_indices = @transform_0, window_bounds = array<i64: 8, 32>}, {pipeline_mode = #tpu.pipeline_mode<synchronous>, transform_indices = @transform_1, window_bounds = array<i64: 32, 64>}, {pipeline_mode = #tpu.pipeline_mode<synchronous>, transform_indices = @transform_2, window_bounds = array<i64: 1, 64>}, {pipeline_mode = #tpu.pipeline_mode<synchronous>, transform_indices = @transform_3, window_bounds = array<i64: 64, 64>}, {pipeline_mode = #tpu.pipeline_mode<synchronous>, transform_indices = @transform_4, window_bounds = array<i64: 1, 64>}, {pipeline_mode = #tpu.pipeline_mode<synchronous>, transform_indices = @transform_5, window_bounds = array<i64: 64, 128>}, {pipeline_mode = #tpu.pipeline_mode<synchronous>, transform_indices = @transform_6, window_bounds = array<i64: 1, 128>}, {transform_indices = @transform_7, window_bounds = array<i64: 8, 128>}]} {
    %c0 = arith.constant 0 : index
    %c0_0 = arith.constant 0 : index
    %0 = vector.load %arg1[%c0, %c0_0] : memref<8x32xf32, #tpu.memory_space<vmem>>, vector<8x32xf32>
    %c0_1 = arith.constant 0 : index
    %c0_2 = arith.constant 0 : index
    %1 = vector.load %arg3[%c0_1, %c0_2] : memref<1x64xf32, #tpu.memory_space<vmem>>, vector<1x64xf32>
    %c0_3 = arith.constant 0 : index
    %c0_4 = arith.constant 0 : index
    %2 = vector.load %arg5[%c0_3, %c0_4] : memref<1x64xf32, #tpu.memory_space<vmem>>, vector<1x64xf32>
    %c0_5 = arith.constant 0 : index
    %c0_6 = arith.constant 0 : index
    %3 = vector.load %arg7[%c0_5, %c0_6] : memref<1x128xf32, #tpu.memory_space<vmem>>, vector<1x128xf32>
    %c0_7 = arith.constant 0 : index
    %c0_8 = arith.constant 0 : index
    %4 = vector.load %arg2[%c0_7, %c0_8] : memref<32x64xf32, #tpu.memory_space<vmem>>, vector<32x64xf32>
    %cst = arith.constant dense<0.000000e+00> : vector<8x64xf32>
    %5 = tpu.matmul %0, %4, %cst {dimension_numbers = #tpu.dot_dimension_numbers<[1], [0], [0], [1], [0, 0, 1, 1], [], []>} : vector<8x32xf32>, vector<32x64xf32>, vector<8x64xf32> -> vector<8x64xf32>
    %6 = vector.broadcast %1 : vector<1x64xf32> to vector<8x64xf32>
    %7 = arith.addf %5, %6 : vector<8x64xf32>
    %cst_9 = arith.constant 0.000000e+00 : f32
    %8 = vector.broadcast %cst_9 : f32 to vector<8x64xf32>
    %9 = arith.maximumf %7, %8 : vector<8x64xf32>
    %c0_10 = arith.constant 0 : index
    %c0_11 = arith.constant 0 : index
    %10 = vector.load %arg4[%c0_10, %c0_11] : memref<64x64xf32, #tpu.memory_space<vmem>>, vector<64x64xf32>
    %cst_12 = arith.constant dense<0.000000e+00> : vector<8x64xf32>
    %11 = tpu.matmul %9, %10, %cst_12 {dimension_numbers = #tpu.dot_dimension_numbers<[1], [0], [0], [1], [0, 0, 1, 1], [], []>} : vector<8x64xf32>, vector<64x64xf32>, vector<8x64xf32> -> vector<8x64xf32>
    %12 = vector.broadcast %2 : vector<1x64xf32> to vector<8x64xf32>
    %13 = arith.addf %11, %12 : vector<8x64xf32>
    %cst_13 = arith.constant 0.000000e+00 : f32
    %14 = vector.broadcast %cst_13 : f32 to vector<8x64xf32>
    %15 = arith.maximumf %13, %14 : vector<8x64xf32>
    %c0_14 = arith.constant 0 : index
    %c0_15 = arith.constant 0 : index
    %16 = vector.load %arg6[%c0_14, %c0_15] : memref<64x128xf32, #tpu.memory_space<vmem>>, vector<64x128xf32>
    %cst_16 = arith.constant dense<0.000000e+00> : vector<8x128xf32>
    %17 = tpu.matmul %15, %16, %cst_16 {dimension_numbers = #tpu.dot_dimension_numbers<[1], [0], [0], [1], [0, 0, 1, 1], [], []>} : vector<8x64xf32>, vector<64x128xf32>, vector<8x128xf32> -> vector<8x128xf32>
    %18 = vector.broadcast %3 : vector<1x128xf32> to vector<8x128xf32>
    %19 = arith.addf %17, %18 : vector<8x128xf32>
    %cst_17 = arith.constant dense<0xFF800000> : vector<8xf32>
    %20 = vector.multi_reduction <maximumf>, %19, %cst_17 [1] : vector<8x128xf32> to vector<8xf32>
    %21 = vector.shape_cast %20 : vector<8xf32> to vector<8x1xf32>
    %22 = vector.broadcast %21 : vector<8x1xf32> to vector<8x128xf32>
    %23 = arith.subf %19, %22 : vector<8x128xf32>
    %24 = math.exp %23 : vector<8x128xf32>
    %cst_18 = arith.constant dense<0.000000e+00> : vector<8xf32>
    %25 = vector.multi_reduction <add>, %24, %cst_18 [1] : vector<8x128xf32> to vector<8xf32>
    %26 = vector.shape_cast %25 : vector<8xf32> to vector<8x1xf32>
    %27 = vector.broadcast %26 : vector<8x1xf32> to vector<8x128xf32>
    %28 = arith.divf %24, %27 : vector<8x128xf32>
    %c0_19 = arith.constant 0 : index
    %c0_20 = arith.constant 0 : index
    %29 = vector.load %arg8[%c0_19, %c0_20] : memref<8x128xf32, #tpu.memory_space<vmem>>, vector<8x128xf32>
    tpu.vector_store %arg8[%c0_19, %c0_20], %28 {strides = array<i32>} : memref<8x128xf32, #tpu.memory_space<vmem>>, vector<8x128xf32>,
    return
  }
  func.func @transform_0(%arg0: i32) -> (i32, i32) {
    %c0_i32 = arith.constant 0 : i32
    %c0_i32_0 = arith.constant 0 : i32
    return %arg0, %c0_i32 : i32, i32
  }
  func.func @transform_1(%arg0: i32) -> (i32, i32) {
    %c0_i32 = arith.constant 0 : i32
    %c0_i32_0 = arith.constant 0 : i32
    %c0_i32_1 = arith.constant 0 : i32
    return %c0_i32, %c0_i32_0 : i32, i32
  }
  func.func @transform_2(%arg0: i32) -> (i32, i32) {
    %c0_i32 = arith.constant 0 : i32
    %c0_i32_0 = arith.constant 0 : i32
    %c0_i32_1 = arith.constant 0 : i32
    return %c0_i32, %c0_i32_0 : i32, i32
  }
  func.func @transform_3(%arg0: i32) -> (i32, i32) {
    %c0_i32 = arith.constant 0 : i32
    %c0_i32_0 = arith.constant 0 : i32
    %c0_i32_1 = arith.constant 0 : i32
    return %c0_i32, %c0_i32_0 : i32, i32
  }
  func.func @transform_4(%arg0: i32) -> (i32, i32) {
    %c0_i32 = arith.constant 0 : i32
    %c0_i32_0 = arith.constant 0 : i32
    %c0_i32_1 = arith.constant 0 : i32
    return %c0_i32, %c0_i32_0 : i32, i32
  }
  func.func @transform_5(%arg0: i32) -> (i32, i32) {
    %c0_i32 = arith.constant 0 : i32
    %c0_i32_0 = arith.constant 0 : i32
    %c0_i32_1 = arith.constant 0 : i32
    return %c0_i32, %c0_i32_0 : i32, i32
  }
  func.func @transform_6(%arg0: i32) -> (i32, i32) {
    %c0_i32 = arith.constant 0 : i32
    %c0_i32_0 = arith.constant 0 : i32
    %c0_i32_1 = arith.constant 0 : i32
    return %c0_i32, %c0_i32_0 : i32, i32
  }
  func.func @transform_7(%arg0: i32) -> (i32, i32) {
    %c0_i32 = arith.constant 0 : i32
    %c0_i32_0 = arith.constant 0 : i32
    return %arg0, %c0_i32 : i32, i32
  }
}

</mosaic_0001>

<llo_original>
// kernel: tpu_custom_call.1
$region0: #{tpu_custom_call.1}
  #allocation0 [shape = 'u32[]', space=smem, size = 0x4, offset = 0x4, fixed_abs, tag = 'smem constant byte address 0x4 - core index']
  #allocation1 [shape = 'u32[144,128]{1,0:T(1,128)}', space=vmem, size = 0x12000, scoped, tag = 'internal scratch']
  %s0 = inlined_call_operand.hbm [shape: f32[8,32], index: 0, kind: input, shape index: {}]
  %s1 = inlined_call_operand.hbm [shape: f32[32,64], index: 1, kind: input, shape index: {}]
  %s2 = inlined_call_operand.vmem [shape: f32[1,64], index: 2, kind: input, shape index: {}]
  %s3 = inlined_call_operand.hbm [shape: f32[64,64], index: 3, kind: input, shape index: {}]
  %s4 = inlined_call_operand.vmem [shape: f32[1,64], index: 4, kind: input, shape index: {}]
  %s5 = inlined_call_operand.hbm [shape: f32[64,128], index: 5, kind: input, shape index: {}]
  %s6 = inlined_call_operand.vmem [shape: f32[1,128], index: 6, kind: input, shape index: {}]
  %s7 = inlined_call_operand.hbm [shape: f32[8,128], index: 7, kind: output, shape index: {}]
  %s8 = sld [smem:[#allocation0]]
  $region54: #{tpu_custom_call.1} parent=0
    _
  %s10 = ssub.s32 1, %s8
  %s11 = scalar_select 0, %s10, %s8
  $region1: #{tpu_custom_call.1} parent=0
    #allocation2 [shape = 'u8[4096]{0}', space=vmem, size = 0x1000, scoped, tag = 'input window, operand 0, single buffered']
    #allocation3 [shape = 's32[1]{0}', space=sflag, size = 0x4, scoped, tag = 'scoped memory for tpu_custom_call.1']
    #allocation4 [shape = 's32[1]{0}', space=sflag, size = 0x4, scoped, tag = 'scoped memory for tpu_custom_call.1']
    #allocation5 [shape = 'u8[16384]{0}', space=vmem, size = 0x4000, scoped, tag = 'input window, operand 1, single buffered']
    #allocation6 [shape = 's32[1]{0}', space=sflag, size = 0x4, scoped, tag = 'scoped memory for tpu_custom_call.1']
    #allocation7 [shape = 'u8[32768]{0}', space=vmem, size = 0x8000, scoped, tag = 'input window, operand 3, single buffered']
    #allocation8 [shape = 'u8[32768]{0}', space=vmem, size = 0x8000, scoped, tag = 'input window, operand 5, single buffered']
    #allocation9 [shape = 's32[1]{0}', space=sflag, size = 0x4, scoped, tag = 'scoped memory for tpu_custom_call.1']
    #allocation10 [shape = 'u8[4096]{0}', space=vmem, size = 0x1000, scoped, tag = 'output window, operand 0, single buffered']
    %12 = vsyncpa [#allocation3], 0
    %13 = vsyncpa [#allocation6], 0
    %14 = vsyncpa [#allocation9], 0
    %15 = vsyncpa [#allocation4], 0
    // Predicated region
    $region2: #{tpu_custom_call.1} parent=1 // pred_check
      _
    $region3: #{tpu_custom_call.1} parent=1 // pred_check_branch
      %17 = sbr.rel (0) target = $region5
    $region4: #{tpu_custom_call.1} parent=1 // pred_region
      %s19 = ssub.s32 128, 128
      %20 = vsyncadd [#allocation3], %s19
      %s22 = sshll.u32 [#allocation2], 4
      %s23 = int_to_ptr.vmem [resolvable:$true] %s22
      %25 = dma.hbm_to_vmem [thread:$0]  %s0, 128, %s23, [#allocation3]
    $region5: #{tpu_custom_call.1} parent=1 // pred_fallthru
      _
    // Predicated region
    $region6: #{tpu_custom_call.1} parent=1 // pred_check
      _
    $region7: #{tpu_custom_call.1} parent=1 // pred_check_branch
      %27 = sbr.rel (0) target = $region9
    $region8: #{tpu_custom_call.1} parent=1 // pred_region
      %s29 = ssub.s32 512, 512
      %30 = vsyncadd [#allocation6], %s29
      %s31 = sshll.u32 [#allocation5], 4
      %s32 = int_to_ptr.vmem [resolvable:$true] %s31
      %37 = dma.hbm_to_vmem [thread:$0]  %s1, 512, %s32, [#allocation6], 128, 128, 8
    $region9: #{tpu_custom_call.1} parent=1 // pred_fallthru
      _
    // Predicated region
    $region10: #{tpu_custom_call.1} parent=1 // pred_check
      _
    $region11: #{tpu_custom_call.1} parent=1 // pred_check_branch
      %39 = sbr.rel (0) target = $region13
    $region12: #{tpu_custom_call.1} parent=1 // pred_region
      _
    $region13: #{tpu_custom_call.1} parent=1 // pred_fallthru
      _
    // Predicated region
    $region14: #{tpu_custom_call.1} parent=1 // pred_check
      _
    $region15: #{tpu_custom_call.1} parent=1 // pred_check_branch
      %41 = sbr.rel (0) target = $region17
    $region16: #{tpu_custom_call.1} parent=1 // pred_region
      %s43 = ssub.s32 1024, 1024
      %44 = vsyncadd [#allocation6], %s43
      %s45 = sshll.u32 [#allocation7], 4
      %s46 = int_to_ptr.vmem [resolvable:$true] %s45
      %51 = dma.hbm_to_vmem [thread:$0]  %s3, 1024, %s46, [#allocation6], 128, 128, 8
    $region17: #{tpu_custom_call.1} parent=1 // pred_fallthru
      _
    // Predicated region
    $region18: #{tpu_custom_call.1} parent=1 // pred_check
      _
    $region19: #{tpu_custom_call.1} parent=1 // pred_check_branch
      %53 = sbr.rel (0) target = $region21
    $region20: #{tpu_custom_call.1} parent=1 // pred_region
      _
    $region21: #{tpu_custom_call.1} parent=1 // pred_fallthru
      _
    // Predicated region
    $region22: #{tpu_custom_call.1} parent=1 // pred_check
      _
    $region23: #{tpu_custom_call.1} parent=1 // pred_check_branch
      %55 = sbr.rel (0) target = $region25
    $region24: #{tpu_custom_call.1} parent=1 // pred_region
      %s57 = ssub.s32 1024, 1024
      %58 = vsyncadd [#allocation9], %s57
      %s59 = sshll.u32 [#allocation8], 4
      %s60 = int_to_ptr.vmem [resolvable:$true] %s59
      %65 = dma.hbm_to_vmem [thread:$0]  %s5, 1024, %s60, [#allocation9], 128, 128, 8
    $region25: #{tpu_custom_call.1} parent=1 // pred_fallthru
      _
    // Predicated region
    $region26: #{tpu_custom_call.1} parent=1 // pred_check
      _
    $region27: #{tpu_custom_call.1} parent=1 // pred_check_branch
      %67 = sbr.rel (0) target = $region29
    $region28: #{tpu_custom_call.1} parent=1 // pred_region
      _
    $region29: #{tpu_custom_call.1} parent=1 // pred_fallthru
      _
    // Predicated region
    $region30: #{tpu_custom_call.1} parent=1 // pred_check
      _
    $region31: #{tpu_custom_call.1} parent=1 // pred_check_branch
      %69 = sbr.rel (0) target = $region33
    $region32: #{tpu_custom_call.1} parent=1 // pred_region
      %70 = dma.done [#allocation3], 128
    $region33: #{tpu_custom_call.1} parent=1 // pred_fallthru
      _
    // Predicated region
    $region34: #{tpu_custom_call.1} parent=1 // pred_check
      _
    $region35: #{tpu_custom_call.1} parent=1 // pred_check_branch
      %72 = sbr.rel (0) target = $region37
    $region36: #{tpu_custom_call.1} parent=1 // pred_region
      %73 = dma.done [#allocation6], 512
    $region37: #{tpu_custom_call.1} parent=1 // pred_fallthru
      _
    // Predicated region
    $region38: #{tpu_custom_call.1} parent=1 // pred_check
      _
    $region39: #{tpu_custom_call.1} parent=1 // pred_check_branch
      %75 = sbr.rel (0) target = $region41
    $region40: #{tpu_custom_call.1} parent=1 // pred_region
      %76 = dma.done [#allocation6], 1024
    $region41: #{tpu_custom_call.1} parent=1 // pred_fallthru
      _
    // Predicated region
    $region42: #{tpu_custom_call.1} parent=1 // pred_check
      _
    $region43: #{tpu_custom_call.1} parent=1 // pred_check_branch
      %78 = sbr.rel (0) target = $region45
    $region44: #{tpu_custom_call.1} parent=1 // pred_region
      %79 = dma.done [#allocation9], 1024
    $region45: #{tpu_custom_call.1} parent=1 // pred_fallthru
      _
    %v80 = vld [vmem:[#allocation2] sm:$0xff]
    %v81 = vld [vmem:[%s2] sm:$0x1]
    %v82 = vld [vmem:[%s4] sm:$0x1]
    %v83 = vld [vmem:[%s6] sm:$0x1]
    %v84 = vld [vmem:[#allocation5] sm:$0xff]
    %v85 = vld [vmem:[#allocation5 + $0x8] sm:$0xff]
    %v86 = vld [vmem:[#allocation5 + $0x10] sm:$0xff]
    %v87 = vld [vmem:[#allocation5 + $0x18] sm:$0xff]
    %v89 = vlaneseq
    %v90 = vshrl.u32 %v89, 7
    %v91 = vsub.s32 0, %v90
    %v92 = vrot.slane %v81, %v91
    %vm94 = vcmask 261120
    %v96 = vsel %vm94, %v80, 0
    %98 = vmatprep.subr.mxu0 0.0
    %99 = vmatpush1.msra.mxu0 %v84
    %100 = vmatprep.subr.mxu0 0.0
    %101 = vmatpush1.msra.mxu0 %v85
    %102 = vmatprep.subr.mxu0 0.0
    %103 = vmatpush1.msra.mxu0 %v86
    %104 = vmatprep.subr.mxu0 0.0
    %105 = vmatpush1.msra.mxu0 %v87
    %106 = vmatprep.subr.mxu0 0.0
    %107 = vmatpush1.msra.mxu0 0.0
    %108 = vmatprep.subr.mxu0 0.0
    %109 = vmatpush1.msra.mxu0 0.0
    %110 = vmatprep.subr.mxu0 0.0
    %111 = vmatpush1.msra.mxu0 0.0
    %112 = vmatprep.subr.mxu0 0.0
    %113 = vmatpush1.msra.mxu0 0.0
    %114 = vmatprep.subr.mxu0 0.0
    %115 = vmatpush1.msra.mxu0 0.0
    %116 = vmatprep.subr.mxu0 0.0
    %117 = vmatpush1.msra.mxu0 0.0
    %118 = vmatprep.subr.mxu0 0.0
    %119 = vmatpush1.msra.mxu0 0.0
    %120 = vmatprep.subr.mxu0 0.0
    %121 = vmatpush1.msra.mxu0 0.0
    %122 = vmatprep.subr.mxu0 0.0
    %123 = vmatpush1.msra.mxu0 0.0
    %124 = vmatprep.subr.mxu0 0.0
    %125 = vmatpush1.msra.mxu0 0.0
    %126 = vmatprep.subr.mxu0 0.0
    %127 = vmatpush1.msra.mxu0 0.0
    %128 = vmatprep.subr.mxu0 0.0
    %129 = vmatpush1.msra.mxu0 0.0
    %130 = vmatprep.subr.mxu0 0.0
    %131 = vmatpush1.msra.mxu0 0.0
    %132 = vmatprep.subr.mxu0 0.0
    %133 = vmatpush1.msra.mxu0 0.0
    %134 = vmatprep.subr.mxu0 0.0
    %135 = vmatpush1.msra.mxu0 0.0
    %136 = vmatprep.subr.mxu0 0.0
    %137 = vmatpush1.msra.mxu0 0.0
    %138 = vmatprep.subr.mxu0 0.0
    %139 = vmatpush1.msra.mxu0 0.0
    %140 = vmatprep.subr.mxu0 0.0
    %141 = vmatpush1.msra.mxu0 0.0
    %142 = vmatprep.subr.mxu0 0.0
    %143 = vmatpush1.msra.mxu0 0.0
    %144 = vmatprep.subr.mxu0 0.0
    %145 = vmatpush1.msra.mxu0 0.0
    %146 = vmatprep.subr.mxu0 0.0
    %147 = vmatpush1.msra.mxu0 0.0
    %148 = vmatprep.subr.mxu0 0.0
    %149 = vmatpush1.msra.mxu0 0.0
    %150 = vmatprep.subr.mxu0 0.0
    %151 = vmatpush1.msra.mxu0 0.0
    %152 = vmatprep.subr.mxu0 0.0
    %153 = vmatpush1.msra.mxu0 0.0
    %154 = vmatprep.subr.mxu0 0.0
    %155 = vmatpush1.msra.mxu0 0.0
    %156 = vmatprep.subr.mxu0 0.0
    %157 = vmatpush1.msra.mxu0 0.0
    %158 = vmatprep.subr.mxu0 0.0
    %159 = vmatpush1.msra.mxu0 0.0
    %160 = vmatprep.subr.mxu0 0.0
    %161 = vmatpush1.msra.mxu0 0.0
    %162 = vmatprep.mubr.f32.mxu0 0.0
    %163 = vmatmul.mubr.f32.gmra.mrb[0].mxu0 %v96
    %v164 = vpop.f32.mrb[0].mxu0
    %v165 = vadd.f32 %v92, %v164
    %v166 = vpop.f32.mrb[0].mxu0
    %167 = vdwg.mxu0
    %v168 = vmax.f32 %v165, 0.0
    %v169 = vld [vmem:[#allocation7] sm:$0xff]
    %v170 = vld [vmem:[#allocation7 + $0x8] sm:$0xff]
    %v171 = vld [vmem:[#allocation7 + $0x10] sm:$0xff]
    %v172 = vld [vmem:[#allocation7 + $0x18] sm:$0xff]
    %v173 = vld [vmem:[#allocation7 + $0x20] sm:$0xff]
    %v174 = vld [vmem:[#allocation7 + $0x28] sm:$0xff]
    %v175 = vld [vmem:[#allocation7 + $0x30] sm:$0xff]
    %v176 = vld [vmem:[#allocation7 + $0x38] sm:$0xff]
    %v178 = vlaneseq
    %v179 = vshrl.u32 %v178, 7
    %v180 = vsub.s32 0, %v179
    %v181 = vrot.slane %v82, %v180
    %vm183 = vcmask 523264
    %v185 = vsel %vm183, %v168, 0
    %187 = vmatprep.subr.mxu0 0.0
    %188 = vmatpush1.msra.mxu0 %v169
    %189 = vmatprep.subr.mxu0 0.0
    %190 = vmatpush1.msra.mxu0 %v170
    %191 = vmatprep.subr.mxu0 0.0
    %192 = vmatpush1.msra.mxu0 %v171
    %193 = vmatprep.subr.mxu0 0.0
    %194 = vmatpush1.msra.mxu0 %v172
    %195 = vmatprep.subr.mxu0 0.0
    %196 = vmatpush1.msra.mxu0 %v173
    %197 = vmatprep.subr.mxu0 0.0
    %198 = vmatpush1.msra.mxu0 %v174
    %199 = vmatprep.subr.mxu0 0.0
    %200 = vmatpush1.msra.mxu0 %v175
    %201 = vmatprep.subr.mxu0 0.0
    %202 = vmatpush1.msra.mxu0 %v176
    %203 = vmatprep.subr.mxu0 0.0
    %204 = vmatpush1.msra.mxu0 0.0
    %205 = vmatprep.subr.mxu0 0.0
    %206 = vmatpush1.msra.mxu0 0.0
    %207 = vmatprep.subr.mxu0 0.0
    %208 = vmatpush1.msra.mxu0 0.0
    %209 = vmatprep.subr.mxu0 0.0
    %210 = vmatpush1.msra.mxu0 0.0
    %211 = vmatprep.subr.mxu0 0.0
    %212 = vmatpush1.msra.mxu0 0.0
    %213 = vmatprep.subr.mxu0 0.0
    %214 = vmatpush1.msra.mxu0 0.0
    %215 = vmatprep.subr.mxu0 0.0
    %216 = vmatpush1.msra.mxu0 0.0
    %217 = vmatprep.subr.mxu0 0.0
    %218 = vmatpush1.msra.mxu0 0.0
    %219 = vmatprep.subr.mxu0 0.0
    %220 = vmatpush1.msra.mxu0 0.0
    %221 = vmatprep.subr.mxu0 0.0
    %222 = vmatpush1.msra.mxu0 0.0
    %223 = vmatprep.subr.mxu0 0.0
    %224 = vmatpush1.msra.mxu0 0.0
    %225 = vmatprep.subr.mxu0 0.0
    %226 = vmatpush1.msra.mxu0 0.0
    %227 = vmatprep.subr.mxu0 0.0
    %228 = vmatpush1.msra.mxu0 0.0
    %229 = vmatprep.subr.mxu0 0.0
    %230 = vmatpush1.msra.mxu0 0.0
    %231 = vmatprep.subr.mxu0 0.0
    %232 = vmatpush1.msra.mxu0 0.0
    %233 = vmatprep.subr.mxu0 0.0
    %234 = vmatpush1.msra.mxu0 0.0
    %235 = vmatprep.subr.mxu0 0.0
    %236 = vmatpush1.msra.mxu0 0.0
    %237 = vmatprep.subr.mxu0 0.0
    %238 = vmatpush1.msra.mxu0 0.0
    %239 = vmatprep.subr.mxu0 0.0
    %240 = vmatpush1.msra.mxu0 0.0
    %241 = vmatprep.subr.mxu0 0.0
    %242 = vmatpush1.msra.mxu0 0.0
    %243 = vmatprep.subr.mxu0 0.0
    %244 = vmatpush1.msra.mxu0 0.0
    %245 = vmatprep.subr.mxu0 0.0
    %246 = vmatpush1.msra.mxu0 0.0
    %247 = vmatprep.subr.mxu0 0.0
    %248 = vmatpush1.msra.mxu0 0.0
    %249 = vmatprep.subr.mxu0 0.0
    %250 = vmatpush1.msra.mxu0 0.0
    %251 = vmatprep.mubr.f32.mxu0 0.0
    %252 = vmatmul.mubr.f32.gmra.mrb[0].mxu0 %v185
    %v253 = vpop.f32.mrb[0].mxu0
    %v254 = vadd.f32 %v181, %v253
    %v255 = vpop.f32.mrb[0].mxu0
    %256 = vdwg.mxu0
    %v257 = vmax.f32 %v254, 0.0
    %v258 = vld [vmem:[#allocation8] sm:$0xff]
    %v259 = vld [vmem:[#allocation8 + $0x8] sm:$0xff]
    %v260 = vld [vmem:[#allocation8 + $0x10] sm:$0xff]
    %v261 = vld [vmem:[#allocation8 + $0x18] sm:$0xff]
    %v262 = vld [vmem:[#allocation8 + $0x20] sm:$0xff]
    %v263 = vld [vmem:[#allocation8 + $0x28] sm:$0xff]
    %v264 = vld [vmem:[#allocation8 + $0x30] sm:$0xff]
    %v265 = vld [vmem:[#allocation8 + $0x38] sm:$0xff]
    %v267 = vlaneseq
    %v268 = vshrl.u32 %v267, 7
    %v269 = vsub.s32 0, %v268
    %v270 = vrot.slane %v83, %v269
    %v273 = vsel %vm183, %v257, 0
    %275 = vmatprep.subr.mxu0 0.0
    %276 = vmatpush1.msra.mxu0 %v258
    %277 = vmatprep.subr.mxu0 0.0
    %278 = vmatpush1.msra.mxu0 %v259
    %279 = vmatprep.subr.mxu0 0.0
    %280 = vmatpush1.msra.mxu0 %v260
    %281 = vmatprep.subr.mxu0 0.0
    %282 = vmatpush1.msra.mxu0 %v261
    %283 = vmatprep.subr.mxu0 0.0
    %284 = vmatpush1.msra.mxu0 %v262
    %285 = vmatprep.subr.mxu0 0.0
    %286 = vmatpush1.msra.mxu0 %v263
    %287 = vmatprep.subr.mxu0 0.0
    %288 = vmatpush1.msra.mxu0 %v264
    %289 = vmatprep.subr.mxu0 0.0
    %290 = vmatpush1.msra.mxu0 %v265
    %291 = vmatprep.subr.mxu0 0.0
    %292 = vmatpush1.msra.mxu0 0.0
    %293 = vmatprep.subr.mxu0 0.0
    %294 = vmatpush1.msra.mxu0 0.0
    %295 = vmatprep.subr.mxu0 0.0
    %296 = vmatpush1.msra.mxu0 0.0
    %297 = vmatprep.subr.mxu0 0.0
    %298 = vmatpush1.msra.mxu0 0.0
    %299 = vmatprep.subr.mxu0 0.0
    %300 = vmatpush1.msra.mxu0 0.0
    %301 = vmatprep.subr.mxu0 0.0
    %302 = vmatpush1.msra.mxu0 0.0
    %303 = vmatprep.subr.mxu0 0.0
    %304 = vmatpush1.msra.mxu0 0.0
    %305 = vmatprep.subr.mxu0 0.0
    %306 = vmatpush1.msra.mxu0 0.0
    %307 = vmatprep.subr.mxu0 0.0
    %308 = vmatpush1.msra.mxu0 0.0
    %309 = vmatprep.subr.mxu0 0.0
    %310 = vmatpush1.msra.mxu0 0.0
    %311 = vmatprep.subr.mxu0 0.0
    %312 = vmatpush1.msra.mxu0 0.0
    %313 = vmatprep.subr.mxu0 0.0
    %314 = vmatpush1.msra.mxu0 0.0
    %315 = vmatprep.subr.mxu0 0.0
    %316 = vmatpush1.msra.mxu0 0.0
    %317 = vmatprep.subr.mxu0 0.0
    %318 = vmatpush1.msra.mxu0 0.0
    %319 = vmatprep.subr.mxu0 0.0
    %320 = vmatpush1.msra.mxu0 0.0
    %321 = vmatprep.subr.mxu0 0.0
    %322 = vmatpush1.msra.mxu0 0.0
    %323 = vmatprep.subr.mxu0 0.0
    %324 = vmatpush1.msra.mxu0 0.0
    %325 = vmatprep.subr.mxu0 0.0
    %326 = vmatpush1.msra.mxu0 0.0
    %327 = vmatprep.subr.mxu0 0.0
    %328 = vmatpush1.msra.mxu0 0.0
    %329 = vmatprep.subr.mxu0 0.0
    %330 = vmatpush1.msra.mxu0 0.0
    %331 = vmatprep.subr.mxu0 0.0
    %332 = vmatpush1.msra.mxu0 0.0
    %333 = vmatprep.subr.mxu0 0.0
    %334 = vmatpush1.msra.mxu0 0.0
    %335 = vmatprep.subr.mxu0 0.0
    %336 = vmatpush1.msra.mxu0 0.0
    %337 = vmatprep.subr.mxu0 0.0
    %338 = vmatpush1.msra.mxu0 0.0
    %339 = vmatprep.mubr.f32.mxu0 0.0
    %340 = vmatmul.mubr.f32.gmra.mrb[0].mxu0 %v273
    %v341 = vpop.f32.mrb[0].mxu0
    %v342 = vadd.f32 %v270, %v341
    %v343 = vpop.f32.mrb[0].mxu0
    %344 = vdwg.mxu0
    %345 = vmax.xlane.f32.xlu0 %v342
    %v346 = vpop.xlane.xlu0 %345
    %v347 = vsub.f32 %v342, %v346
    %v348 = vmul.f32 %v347, 1.442695
    %v349 = vpow.pop %v348
    %350 = vadd.xlane.f32.xlu0 %v349
    %v351 = vpop.xlane.xlu0 %350
    %v352 = vrcp.pop %v351
    %v353 = vmul.f32 %v349, %v352
    %354 = vst [vmem:[#allocation10] sm:$0xff] %v353
    // Predicated region
    $region46: #{tpu_custom_call.1} parent=1 // pred_check
      _
    $region47: #{tpu_custom_call.1} parent=1 // pred_check_branch
      %356 = sbr.rel (0) target = $region49
    $region48: #{tpu_custom_call.1} parent=1 // pred_region
      %s358 = ssub.s32 128, 128
      %359 = vsyncadd [#allocation4], %s358
      %s361 = sshll.u32 [#allocation10], 4
      %s362 = int_to_ptr.vmem [resolvable:$true] %s361
      %364 = dma.vmem_to_hbm [thread:$0]  %s362, 128, %s7, [#allocation4]
    $region49: #{tpu_custom_call.1} parent=1 // pred_fallthru
      _
    // Predicated region
    $region50: #{tpu_custom_call.1} parent=1 // pred_check
      _
    $region51: #{tpu_custom_call.1} parent=1 // pred_check_branch
      %366 = sbr.rel (0) target = $region53
    $region52: #{tpu_custom_call.1} parent=1 // pred_region
      %367 = dma.done [#allocation4], 128
    $region53: #{tpu_custom_call.1} parent=1 // pred_fallthru
      _
    %368 = vsyncpa [#allocation3], 1
    %369 = vsyncpa [#allocation6], 1
    %370 = vsyncpa [#allocation9], 1
    %371 = vsyncpa [#allocation4], 1

</llo_original>
